<compile_context>
chip_gen: v5e
topology: v5e:2x2
jax: 0.10.0
libtpu: 0.0.40
codegen_flags: <defaults>
</compile_context>

<pallas_src>
import math

import jax
import jax.numpy as jnp
from jax.experimental import pallas as pl
from jax.experimental.pallas import tpu as pltpu


# ---------------------------------------------------------------------------
# helpers
# ---------------------------------------------------------------------------
def _pad8(n):
    return ((n + 7) // 8) * 8


def _pick_q_tile(q, widths, itemsize, sublanes,
                 max_lanes=32768, vmem_budget=8 << 20):
    """Pick a query tile for the lane-dense (Q*D) fold.

    Returns the largest tile t such that t*w is a multiple of 128 for every
    feature width w (unmasked, relayout-free stores), the widest lane block
    stays <= max_lanes, the double-buffered (sublane-padded) VMEM footprint
    stays under vmem_budget, and the grid has >= 2 steps so the pipeline can
    overlap prefetch with writeback.  Falls back to the full axis (block ==
    array dims, always legal) when no aligned sub-tile exists.
    """
    # smallest #queries whose folded lane width is 128-aligned for all widths
    qa = 1
    for w in widths:
        qa = math.lcm(qa, 128 // math.gcd(128, w))
    if qa >= q:
        return q                                  # no aligned sub-tile
    pad_sub = _pad8(sublanes)
    # double-buffered input + output bytes per query, across all arrays
    bytes_per_q = 4 * pad_sub * sum(widths) * itemsize
    t_cap = min(q - 1,
                max_lanes // max(widths),
                max(qa, vmem_budget // max(bytes_per_q, 1)))
    target = min(t_cap, (q + 1) // 2)             # >= 2 grid steps
    t = (target // qa) * qa
    if t < qa:
        return q
    # prefer an exact divisor of q (no masked tail) if a comparably large one
    # exists; otherwise accept a masked tail on the last block.
    for cand in range(t, max(qa, t // 2) - 1, -qa):
        if q % cand == 0:
            return cand
    return t


def _spec(block_shape, index_map, buffers=2):
    """BlockSpec with optional >2-deep pipelining, falling back gracefully."""
    if buffers > 2:
        try:
            return pl.BlockSpec(block_shape, index_map,
                                pipeline_mode=pl.Buffered(buffers))
        except Exception:  # older JAX without pipeline_mode / Buffered
            pass
    return pl.BlockSpec(block_shape, index_map)


# ---------------------------------------------------------------------------
# Kernel 1 (eval): select the last decoder layer for bboxes AND logits in one
# fused, lane-dense, query-chunked call (chunking overlaps read/write DMA).
# ---------------------------------------------------------------------------
def _select_last_kernel(dec_b_ref, dec_l_ref, out_b_ref, out_l_ref):
    # straight VMEM copies — no per-element work on the store path.
    out_b_ref[...] = dec_b_ref[0]
    out_l_ref[...] = dec_l_ref[0]


def select_last_layer(dec_b, dec_l):
    L, B, Q, Db = dec_b.shape
    Dl = dec_l.shape[-1]
    # lane-dense views: fold (Q, D) into one trailing axis (free reshape).
    db = dec_b.reshape(L, B, Q * Db)
    dl = dec_l.reshape(L, B, Q * Dl)
    itemsize = max(dec_b.dtype.itemsize, dec_l.dtype.itemsize)
    tq = _pick_q_tile(Q, (Db, Dl), itemsize, B)
    wb, wl = tq * Db, tq * Dl
    grid = (pl.cdiv(Q, tq),)

    out_b, out_l = pl.pallas_call(
        _select_last_kernel,
        out_shape=(jax.ShapeDtypeStruct((B, Q * Db), dec_b.dtype),
                   jax.ShapeDtypeStruct((B, Q * Dl), dec_l.dtype)),
        grid=grid,
        in_specs=[
            pl.BlockSpec((1, B, wb), lambda qi: (L - 1, 0, qi)),
            pl.BlockSpec((1, B, wl), lambda qi: (L - 1, 0, qi)),
        ],
        out_specs=[
            pl.BlockSpec((B, wb), lambda qi: (0, qi)),
            pl.BlockSpec((B, wl), lambda qi: (0, qi)),
        ],
        compiler_params=pltpu.CompilerParams(
            dimension_semantics=("arbitrary",)),
    )(db, dl)
    return out_b.reshape(B, Q, Db), out_l.reshape(B, Q, Dl)


# ---------------------------------------------------------------------------
# Kernel 2 (train): fused dn-split + concat for bboxes AND logits.
#   out    = cat([enc[None], dec[:, :, n_dn:]], 0)   -> (L+1, B, n_m, D)
#   dn_out =                 dec[:, :, :n_dn]        -> (L,   B, n_dn, D)
# Each decoder stack is read from HBM exactly once; step 0 writes the encoder
# block, step i>=1 writes decoder layer i-1's matched AND dn halves (each
# output block is written by exactly one grid step).
# ---------------------------------------------------------------------------
def concat_split_enc_dec(enc_b, enc_l, dec_b, dec_l, dn_num_split=None,
                         dec_buffers=3):
    L, B, Q, Db = dec_b.shape
    Dl = dec_l.shape[-1]
    if dn_num_split is None:
        n_dn, n_m = 0, Q
    else:
        # like torch.split, the split sizes must be static python ints
        # (they determine output shapes).
        n_dn, n_m = int(dn_num_split[0]), int(dn_num_split[1])
    assert n_dn + n_m == Q
    assert enc_b.shape == (B, n_m, Db) and enc_l.shape == (B, n_m, Dl)
    has_dn = n_dn > 0

    dn_wb, m_wb = n_dn * Db, n_m * Db
    dn_wl, m_wl = n_dn * Dl, n_m * Dl

    # lane-dense views (free reshapes: trailing contiguous dims merged).
    db = dec_b.reshape(L, B, Q * Db)
    dl = dec_l.reshape(L, B, Q * Dl)
    eb = enc_b.reshape(B, m_wb)
    el = enc_l.reshape(B, m_wl)

    def kernel(enc_b_ref, enc_l_ref, dec_b_ref, dec_l_ref,
               out_b_ref, out_l_ref, *dn_refs):
        i = pl.program_id(0)

        @pl.when(i == 0)
        def _():
            out_b_ref[0] = enc_b_ref[...]
            out_l_ref[0] = enc_l_ref[...]

        @pl.when(i > 0)
        def _():
            lyr_b = dec_b_ref[0]      # (B, Q*Db) — decoder layer i-1
            lyr_l = dec_l_ref[0]
            out_b_ref[0] = lyr_b[:, dn_wb:]
            out_l_ref[0] = lyr_l[:, dn_wl:]
            if has_dn:
                dn_b_ref, dn_l_ref = dn_refs
                dn_b_ref[0] = lyr_b[:, :dn_wb]
                dn_l_ref[0] = lyr_l[:, :dn_wl]

    # Step 0 maps the dec blocks to layer 0 — the same block step 1 uses — so
    # the pipeline just prefetches layer 0 one step early (block index is
    # unchanged between steps 0 and 1; no wasted DMA, block stays resident).
    dec_layer_idx = lambda i: (jnp.maximum(i - 1, 0), 0, 0)

    in_specs = [
        pl.BlockSpec((B, m_wb), lambda i: (0, 0)),
        pl.BlockSpec((B, m_wl), lambda i: (0, 0)),
        _spec((1, B, Q * Db), dec_layer_idx, buffers=dec_buffers),
        _spec((1, B, Q * Dl), dec_layer_idx, buffers=dec_buffers),
    ]
    out_shapes = [jax.ShapeDtypeStruct((L + 1, B, m_wb), dec_b.dtype),
                  jax.ShapeDtypeStruct((L + 1, B, m_wl), dec_l.dtype)]
    out_specs = [pl.BlockSpec((1, B, m_wb), lambda i: (i, 0, 0)),
                 pl.BlockSpec((1, B, m_wl), lambda i: (i, 0, 0))]
    if has_dn:
        out_shapes += [jax.ShapeDtypeStruct((L, B, dn_wb), dec_b.dtype),
                       jax.ShapeDtypeStruct((L, B, dn_wl), dec_l.dtype)]
        out_specs += [pl.BlockSpec((1, B, dn_wb), dec_layer_idx),
                      pl.BlockSpec((1, B, dn_wl), dec_layer_idx)]

    # VMEM estimate per step: sublane-padded (B -> 8), multi-buffered.  Only
    # raise vmem_limit_bytes when the default scoped limit would be exceeded
    # (large class counts / long Q); at COCO-scale DINO shapes this stays off.
    itemsize = max(dec_b.dtype.itemsize, dec_l.dtype.itemsize)
    est_vmem = itemsize * _pad8(B) * (
        (m_wb + m_wl)                         # enc inputs (resident)
        + dec_buffers * (Q * Db + Q * Dl)     # decoder stacks
        + 2 * (m_wb + m_wl)                   # concat outputs (double-buffered)
        + (2 * (dn_wb + dn_wl) if has_dn else 0))
    cp_kwargs = dict(dimension_semantics=("arbitrary",))
    if est_vmem * 3 // 2 > (30 << 20):
        cp_kwargs["vmem_limit_bytes"] = int(est_vmem * 3 // 2)

    results = pl.pallas_call(
        kernel,
        out_shape=tuple(out_shapes),
        grid=(L + 1,),
        in_specs=in_specs,
        out_specs=out_specs,
        compiler_params=pltpu.CompilerParams(**cp_kwargs),
    )(eb, el, db, dl)

    out_b = results[0].reshape(L + 1, B, n_m, Db)
    out_l = results[1].reshape(L + 1, B, n_m, Dl)
    if has_dn:
        dn_b = results[2].reshape(L, B, n_dn, Db)
        dn_l = results[3].reshape(L, B, n_dn, Dl)
    else:
        dn_b, dn_l = None, None
    return out_b, out_l, dn_b, dn_l


# ---------------------------------------------------------------------------
# DINOHead forward
# ---------------------------------------------------------------------------
class DINOHead:
    def __init__(self, training=False):
        self.training = training

    def forward(self, out_transformer, body_feats, inputs=None):
        (dec_out_bboxes, dec_out_logits,
         enc_topk_bboxes, enc_topk_logits, dn_meta) = out_transformer

        if self.training:
            assert inputs is not None
            assert 'gt_bbox' in inputs and 'gt_class' in inputs
            if dn_meta is not None and isinstance(dn_meta, list):
                raise NotImplementedError
            split = dn_meta['dn_num_split'] if dn_meta is not None else None
            (out_bboxes, out_logits,
             dn_out_bboxes, dn_out_logits) = concat_split_enc_dec(
                enc_topk_bboxes, enc_topk_logits,
                dec_out_bboxes, dec_out_logits, dn_num_split=split)
            # TODO(synk): `self.loss` (DINOLoss) is an injected module with no
            # definition in this file; return the tensors it would consume.
            return (out_bboxes, out_logits,
                    dn_out_bboxes, dn_out_logits, dn_meta)
        else:
            bboxes_last, logits_last = select_last_layer(
                dec_out_bboxes, dec_out_logits)
            return (bboxes_last, logits_last, None)


# ---------------------------------------------------------------------------
if __name__ == "__main__":
    key = jax.random.PRNGKey(0)
    L, B, Q, NC = 3, 2, 8, 16      # decoder layers, batch, total queries, classes
    DN, QM = 4, 4                  # dn queries / matched queries (DN + QM == Q)

    k1, k2, k3, k4 = jax.random.split(key, 4)
    dec_out_bboxes = jax.random.uniform(k1, (L, B, Q, 4), jnp.float32)
    dec_out_logits = jax.random.normal(k2, (L, B, Q, NC), jnp.float32)
    enc_topk_bboxes = jax.random.uniform(k3, (B, QM, 4), jnp.float32)
    enc_topk_logits = jax.random.normal(k4, (B, QM, NC), jnp.float32)
    dn_meta = {"dn_num_split": [DN, QM]}
    body_feats = None  # unused by the forward pass

    out_transformer = (dec_out_bboxes, dec_out_logits,
                       enc_topk_bboxes, enc_topk_logits, dn_meta)

    # -------- eval path (the module's actual inference forward) -----------
    head = DINOHead(training=False)
    bboxes_last, logits_last, none_out = head.forward(out_transformer, body_feats)
    jax.block_until_ready(bboxes_last)
    jax.block_until_ready(logits_last)
    assert none_out is None
    assert jnp.allclose(bboxes_last, dec_out_bboxes[-1])
    assert jnp.allclose(logits_last, dec_out_logits[-1])

    # -------- training prep path (fused split + cat in one Pallas call) ---
    head_t = DINOHead(training=True)
    inputs = {"gt_bbox": None, "gt_class": None, "pad_gt_mask": None}
    (out_bboxes, out_logits,
     dn_out_bboxes, dn_out_logits, _) = head_t.forward(
        out_transformer, body_feats, inputs)
    jax.block_until_ready(out_bboxes)
    jax.block_until_ready(out_logits)
    jax.block_until_ready(dn_out_bboxes)
    jax.block_until_ready(dn_out_logits)

    ref_out_bboxes = jnp.concatenate(
        [enc_topk_bboxes[None], dec_out_bboxes[:, :, DN:]], axis=0)
    ref_out_logits = jnp.concatenate(
        [enc_topk_logits[None], dec_out_logits[:, :, DN:]], axis=0)
    assert jnp.allclose(out_bboxes, ref_out_bboxes)
    assert jnp.allclose(out_logits, ref_out_logits)
    assert jnp.allclose(dn_out_bboxes, dec_out_bboxes[:, :, :DN])
    assert jnp.allclose(dn_out_logits, dec_out_logits[:, :, :DN])

    # -------- training prep path without dn (concat-only branch) ----------
    out_transformer_nodn = (dec_out_bboxes[:, :, DN:], dec_out_logits[:, :, DN:],
                            enc_topk_bboxes, enc_topk_logits, None)
    (ob2, ol2, dnb2, dnl2, _) = head_t.forward(
        out_transformer_nodn, body_feats, inputs)
    jax.block_until_ready(ob2)
    assert dnb2 is None and dnl2 is None
    assert jnp.allclose(ob2, ref_out_bboxes)
    assert jnp.allclose(ol2, ref_out_logits)

    print("KERNEL_OK")
</pallas_src>

<mosaic_0001>
module attributes {stable_mosaic.version = 11 : i64} {
  func.func @_select_last_kernel(%arg0: i32, %arg1: memref<1x2x32xf32, #tpu.memory_space<vmem>>, %arg2: memref<1x2x128xf32, #tpu.memory_space<vmem>>, %arg3: memref<2x32xf32, #tpu.memory_space<vmem>>, %arg4: memref<2x128xf32, #tpu.memory_space<vmem>>) attributes {dimension_semantics = [#tpu.dimension_semantics<arbitrary>], iteration_bounds = array<i64: 1>, scalar_prefetch = 0 : i64, scratch_operands = 0 : i64, tpu.core_type = #tpu.core_type<tc>, window_params = [{transform_indices = @transform_0, window_bounds = array<i64: 1, 2, 32>}, {transform_indices = @transform_1, window_bounds = array<i64: 1, 2, 128>}, {transform_indices = @transform_2, window_bounds = array<i64: 2, 32>}, {transform_indices = @transform_3, window_bounds = array<i64: 2, 128>}]} {
    %c0 = arith.constant 0 : index
    %c0_0 = arith.constant 0 : index
    %c0_1 = arith.constant 0 : index
    %0 = vector.load %arg1[%c0, %c0_0, %c0_1] : memref<1x2x32xf32, #tpu.memory_space<vmem>>, vector<1x2x32xf32>
    %1 = vector.shape_cast %0 : vector<1x2x32xf32> to vector<2x32xf32>
    %c0_2 = arith.constant 0 : index
    %c0_3 = arith.constant 0 : index
    %2 = vector.load %arg3[%c0_2, %c0_3] : memref<2x32xf32, #tpu.memory_space<vmem>>, vector<2x32xf32>
    tpu.vector_store %arg3[%c0_2, %c0_3], %1 {strides = array<i32>} : memref<2x32xf32, #tpu.memory_space<vmem>>, vector<2x32xf32>,
    %c0_4 = arith.constant 0 : index
    %c0_5 = arith.constant 0 : index
    %c0_6 = arith.constant 0 : index
    %3 = vector.load %arg2[%c0_4, %c0_5, %c0_6] : memref<1x2x128xf32, #tpu.memory_space<vmem>>, vector<1x2x128xf32>
    %4 = vector.shape_cast %3 : vector<1x2x128xf32> to vector<2x128xf32>
    %c0_7 = arith.constant 0 : index
    %c0_8 = arith.constant 0 : index
    %5 = vector.load %arg4[%c0_7, %c0_8] : memref<2x128xf32, #tpu.memory_space<vmem>>, vector<2x128xf32>
    tpu.vector_store %arg4[%c0_7, %c0_8], %4 {strides = array<i32>} : memref<2x128xf32, #tpu.memory_space<vmem>>, vector<2x128xf32>,
    return
  }
  func.func @transform_0(%arg0: i32) -> (i32, i32, i32) {
    %c2_i32 = arith.constant 2 : i32
    %c0_i32 = arith.constant 0 : i32
    %c0_i32_0 = arith.constant 0 : i32
    return %c2_i32, %c0_i32, %arg0 : i32, i32, i32
  }
  func.func @transform_1(%arg0: i32) -> (i32, i32, i32) {
    %c2_i32 = arith.constant 2 : i32
    %c0_i32 = arith.constant 0 : i32
    %c0_i32_0 = arith.constant 0 : i32
    return %c2_i32, %c0_i32, %arg0 : i32, i32, i32
  }
  func.func @transform_2(%arg0: i32) -> (i32, i32) {
    %c0_i32 = arith.constant 0 : i32
    %c0_i32_0 = arith.constant 0 : i32
    return %c0_i32, %arg0 : i32, i32
  }
  func.func @transform_3(%arg0: i32) -> (i32, i32) {
    %c0_i32 = arith.constant 0 : i32
    %c0_i32_0 = arith.constant 0 : i32
    return %c0_i32, %arg0 : i32, i32
  }
}

</mosaic_0001>

<llo_original>
// kernel: tpu_custom_call.1
$region0: #{tpu_custom_call.1}
  #allocation0 [shape = 'u32[]', space=smem, size = 0x4, offset = 0x4, fixed_abs, tag = 'smem constant byte address 0x4 - core index']
  #allocation1 [shape = 'u32[72,128]{1,0:T(1,128)}', space=vmem, size = 0x9000, scoped, tag = 'internal scratch']
  %s0 = inlined_call_operand.hbm [shape: f32[3,2,32], index: 0, kind: input, shape index: {}]
  %s1 = inlined_call_operand.hbm [shape: f32[3,2,128], index: 1, kind: input, shape index: {}]
  %s2 = inlined_call_operand.hbm [shape: f32[2,32], index: 2, kind: output, shape index: {0}]
  %s3 = inlined_call_operand.hbm [shape: f32[2,128], index: 3, kind: output, shape index: {1}]
  %4 = xla_tuple %s2, %s3
  %s5 = sld [smem:[#allocation0]]
  $region34: #{tpu_custom_call.1} parent=0
    _
  %s7 = ssub.s32 1, %s5
  %s8 = scalar_select 0, %s7, %s5
  $region1: #{tpu_custom_call.1} parent=0
    #allocation2 [shape = 'u8[1024]{0}', space=vmem, size = 0x400, scoped, tag = 'input window, operand 0, single buffered']
    #allocation3 [shape = 's32[1]{0}', space=sflag, size = 0x4, scoped, tag = 'scoped memory for tpu_custom_call.1']
    #allocation4 [shape = 's32[1]{0}', space=sflag, size = 0x4, scoped, tag = 'scoped memory for tpu_custom_call.1']
    #allocation5 [shape = 'u8[1024]{0}', space=vmem, size = 0x400, scoped, tag = 'input window, operand 1, single buffered']
    #allocation6 [shape = 's32[1]{0}', space=sflag, size = 0x4, scoped, tag = 'scoped memory for tpu_custom_call.1']
    #allocation7 [shape = 'u8[1024]{0}', space=vmem, size = 0x400, scoped, tag = 'output window, operand 0, single buffered']
    #allocation8 [shape = 'u8[1024]{0}', space=vmem, size = 0x400, scoped, tag = 'output window, operand 1, single buffered']
    #allocation9 [shape = 's32[1]{0}', space=sflag, size = 0x4, scoped, tag = 'scoped memory for tpu_custom_call.1']
    %9 = vsyncpa [#allocation3], 0
    %10 = vsyncpa [#allocation6], 0
    %11 = vsyncpa [#allocation4], 0
    %12 = vsyncpa [#allocation9], 0
    // Predicated region
    $region2: #{tpu_custom_call.1} parent=1 // pred_check
      _
    $region3: #{tpu_custom_call.1} parent=1 // pred_check_branch
      %14 = sbr.rel (0) target = $region5
    $region4: #{tpu_custom_call.1} parent=1 // pred_region
      %16 = vsyncadd [#allocation3], 0
      %s17 = scalar_lea.hbm %s0, 4
      %s19 = sshll.u32 %s17, 4
      %s20 = int_to_ptr.hbm [resolvable:$true] %s19
      %s21 = sshll.u32 [#allocation2], 4
      %s22 = int_to_ptr.vmem [resolvable:$true] %s21
      %24 = dma.hbm_to_vmem [thread:$0]  %s20, 32, %s22, [#allocation3]
    $region5: #{tpu_custom_call.1} parent=1 // pred_fallthru
      _
    // Predicated region
    $region6: #{tpu_custom_call.1} parent=1 // pred_check
      _
    $region7: #{tpu_custom_call.1} parent=1 // pred_check_branch
      %26 = sbr.rel (0) target = $region9
    $region8: #{tpu_custom_call.1} parent=1 // pred_region
      %28 = vsyncadd [#allocation6], 0
      %s29 = scalar_lea.hbm %s1, 4
      %s31 = sshll.u32 %s29, 4
      %s32 = int_to_ptr.hbm [resolvable:$true] %s31
      %s33 = sshll.u32 [#allocation5], 4
      %s34 = int_to_ptr.vmem [resolvable:$true] %s33
      %36 = dma.hbm_to_vmem [thread:$0]  %s32, 32, %s34, [#allocation6]
    $region9: #{tpu_custom_call.1} parent=1 // pred_fallthru
      _
    // Predicated region
    $region10: #{tpu_custom_call.1} parent=1 // pred_check
      _
    $region11: #{tpu_custom_call.1} parent=1 // pred_check_branch
      %38 = sbr.rel (0) target = $region13
    $region12: #{tpu_custom_call.1} parent=1 // pred_region
      %40 = dma.done [#allocation3], 32
    $region13: #{tpu_custom_call.1} parent=1 // pred_fallthru
      _
    // Predicated region
    $region14: #{tpu_custom_call.1} parent=1 // pred_check
      _
    $region15: #{tpu_custom_call.1} parent=1 // pred_check_branch
      %42 = sbr.rel (0) target = $region17
    $region16: #{tpu_custom_call.1} parent=1 // pred_region
      %44 = dma.done [#allocation6], 32
    $region17: #{tpu_custom_call.1} parent=1 // pred_fallthru
      _
    %v45 = vld [vmem:[#allocation2] sm:$0x3]
    %vm46 = vcmask 254976
    %47 = vst.msk [vmem:[#allocation7] sm:$0x3] %vm46, %v45
    %v48 = vld [vmem:[#allocation5] sm:$0x3]
    %49 = vst [vmem:[#allocation8] sm:$0x3] %v48
    // Predicated region
    $region18: #{tpu_custom_call.1} parent=1 // pred_check
      _
    $region19: #{tpu_custom_call.1} parent=1 // pred_check_branch
      %51 = sbr.rel (0) target = $region21
    $region20: #{tpu_custom_call.1} parent=1 // pred_region
      %53 = vsyncadd [#allocation4], 0
      %s55 = sshll.u32 [#allocation7], 4
      %s56 = int_to_ptr.vmem [resolvable:$true] %s55
      %s57 = sshll.u32 %s2, 4
      %s58 = int_to_ptr.hbm [resolvable:$true] %s57
      %60 = dma.vmem_to_hbm [thread:$0]  %s56, 32, %s58, [#allocation4]
    $region21: #{tpu_custom_call.1} parent=1 // pred_fallthru
      _
    // Predicated region
    $region22: #{tpu_custom_call.1} parent=1 // pred_check
      _
    $region23: #{tpu_custom_call.1} parent=1 // pred_check_branch
      %62 = sbr.rel (0) target = $region25
    $region24: #{tpu_custom_call.1} parent=1 // pred_region
      %64 = vsyncadd [#allocation9], 0
      %s66 = sshll.u32 [#allocation8], 4
      %s67 = int_to_ptr.vmem [resolvable:$true] %s66
      %s68 = sshll.u32 %s3, 4
      %s69 = int_to_ptr.hbm [resolvable:$true] %s68
      %71 = dma.vmem_to_hbm [thread:$0]  %s67, 32, %s69, [#allocation9]
    $region25: #{tpu_custom_call.1} parent=1 // pred_fallthru
      _
    // Predicated region
    $region26: #{tpu_custom_call.1} parent=1 // pred_check
      _
    $region27: #{tpu_custom_call.1} parent=1 // pred_check_branch
      %73 = sbr.rel (0) target = $region29
    $region28: #{tpu_custom_call.1} parent=1 // pred_region
      %75 = dma.done [#allocation4], 32
    $region29: #{tpu_custom_call.1} parent=1 // pred_fallthru
      _
    // Predicated region
    $region30: #{tpu_custom_call.1} parent=1 // pred_check
      _
    $region31: #{tpu_custom_call.1} parent=1 // pred_check_branch
      %77 = sbr.rel (0) target = $region33
    $region32: #{tpu_custom_call.1} parent=1 // pred_region
      %79 = dma.done [#allocation9], 32
    $region33: #{tpu_custom_call.1} parent=1 // pred_fallthru
      _
    %80 = vsyncpa [#allocation3], 1
    %81 = vsyncpa [#allocation6], 1
    %82 = vsyncpa [#allocation4], 1
    %83 = vsyncpa [#allocation9], 1

</llo_original>
